<compile_context>
chip_gen: v5e
topology: v5e:2x2
jax: 0.10.0
libtpu: 0.0.40
codegen_flags: <defaults>
</compile_context>

<pallas_src>
import functools

import jax
import jax.numpy as jnp
from jax import lax
from jax.experimental import pallas as pl
from jax.experimental.pallas import tpu as pltpu

_LANE = 128                 # pad C_out and the folded contraction to this width
_TILE_M = 256               # rows per grid step: multiple of 8, modest enough for
                            # v5e and for v7x's 64 MiB VMEM, fine on v6e
_VMEM_LIMIT = 32 * 1024 * 1024


def _round_up(x, m):
    return ((x + m - 1) // m) * m


# ---------------- phase 1: fused ReLU + conv-as-matmul + BN partial stats ----

def _conv_stats_kernel(p_ref, w_ref, y_ref, sum_ref, ssq_ref):
    """One TM-row band of im2col patches -> conv tile + per-tile sum / sum^2."""
    # p_ref: (TM, Kc_pad) bf16 patches (zero rows/cols for padding; relu(0)=0 so safe)
    # w_ref: (Kc_pad, Co_pad) bf16
    x = jnp.maximum(p_ref[...], jnp.zeros((), p_ref.dtype))          # fused ReLU (VPU)
    acc = jnp.dot(x, w_ref[...], preferred_element_type=jnp.float32)  # MXU, f32 acc
    y_ref[...] = acc
    sum_ref[...] = jnp.sum(acc, axis=0, keepdims=True)[None]
    ssq_ref[...] = jnp.sum(acc * acc, axis=0, keepdims=True)[None]


def _conv_phase(patches, w2d, tile_m):
    m_pad, kc_pad = patches.shape
    co_pad = w2d.shape[1]
    n_tiles = m_pad // tile_m
    cost = pl.CostEstimate(
        flops=2 * m_pad * kc_pad * co_pad,
        transcendentals=0,
        bytes_accessed=(patches.size * 2 + w2d.size * 2
                        + m_pad * co_pad * 4 + 2 * n_tiles * co_pad * 4))
    return pl.pallas_call(
        _conv_stats_kernel,
        grid=(n_tiles,),
        in_specs=[
            pl.BlockSpec((tile_m, kc_pad), lambda i: (i, 0)),
            pl.BlockSpec((kc_pad, co_pad), lambda i: (0, 0)),
        ],
        out_specs=(
            pl.BlockSpec((tile_m, co_pad), lambda i: (i, 0)),
            pl.BlockSpec((1, 1, co_pad), lambda i: (i, 0, 0)),
            pl.BlockSpec((1, 1, co_pad), lambda i: (i, 0, 0)),
        ),
        out_shape=(
            jax.ShapeDtypeStruct((m_pad, co_pad), jnp.float32),
            jax.ShapeDtypeStruct((n_tiles, 1, co_pad), jnp.float32),
            jax.ShapeDtypeStruct((n_tiles, 1, co_pad), jnp.float32),
        ),
        compiler_params=pltpu.CompilerParams(
            dimension_semantics=("parallel",),
            vmem_limit_bytes=_VMEM_LIMIT),
        cost_estimate=cost,
    )(patches, w2d)


# ---------------- phase 2: lane-dense BN apply (y * scale + shift) -----------

def _bn_apply_kernel(y_ref, scale_ref, shift_ref, o_ref):
    o_ref[...] = y_ref[...] * scale_ref[...] + shift_ref[...]


def _bn_phase(y, scale, shift, tile_m):
    m_pad, co_pad = y.shape
    n_tiles = m_pad // tile_m
    cost = pl.CostEstimate(
        flops=2 * m_pad * co_pad,
        transcendentals=0,
        bytes_accessed=2 * m_pad * co_pad * 4 + 2 * co_pad * 4)
    return pl.pallas_call(
        _bn_apply_kernel,
        grid=(n_tiles,),
        in_specs=[
            pl.BlockSpec((tile_m, co_pad), lambda i: (i, 0)),
            pl.BlockSpec((1, co_pad), lambda i: (0, 0)),
            pl.BlockSpec((1, co_pad), lambda i: (0, 0)),
        ],
        out_specs=pl.BlockSpec((tile_m, co_pad), lambda i: (i, 0)),
        out_shape=jax.ShapeDtypeStruct((m_pad, co_pad), jnp.float32),
        compiler_params=pltpu.CompilerParams(
            dimension_semantics=("parallel",),
            vmem_limit_bytes=_VMEM_LIMIT),
        cost_estimate=cost,
    )(y, scale, shift)


# ---------------- public fused op --------------------------------------------

@functools.partial(jax.jit,
                   static_argnames=("stride", "padding", "dilation", "eps",
                                    "tile_m"))
def relu_conv_bn(x_nchw, weight_oihw, gamma_sel, beta_sel, *,
                 stride, padding, dilation, eps=1e-5, tile_m=_TILE_M):
    """Fused ReLU -> Conv2d(no bias) -> (conditional) BatchNorm2d.

    x_nchw:      (N, C_in, H, W)      -- PyTorch NCHW input
    weight_oihw: (C_out, C_in, K, K)  -- PyTorch conv weight layout
    gamma_sel/beta_sel: (C_out,)      -- affine params of the selected BN condition
    Returns (N, C_out, H_out, W_out) float32.
    """
    N, C_in, H, W = x_nchw.shape
    C_out, _, K, _ = weight_oihw.shape
    H_out = (H + 2 * padding - dilation * (K - 1) - 1) // stride + 1
    W_out = (W + 2 * padding - dilation * (K - 1) - 1) // stride + 1
    M = N * H_out * W_out
    Kc = K * K * C_in

    co_pad = _round_up(C_out, _LANE)
    kc_pad = _round_up(Kc, _LANE)
    tm = tile_m if M >= tile_m else _round_up(M, 8)
    m_pad = _round_up(M, tm)

    # --- layout plumbing (plain JAX, fused by XLA): NHWC bf16, pad, im2col ---
    x_nhwc = jnp.transpose(x_nchw.astype(jnp.bfloat16), (0, 2, 3, 1))
    xp = jnp.pad(x_nhwc, ((0, 0), (padding, padding), (padding, padding), (0, 0)))
    taps = []
    for kh in range(K):
        for kw in range(K):
            r0, c0 = kh * dilation, kw * dilation
            taps.append(
                xp[:, r0:r0 + (H_out - 1) * stride + 1:stride,
                      c0:c0 + (W_out - 1) * stride + 1:stride, :])
    patches = jnp.concatenate(taps, axis=-1).reshape(M, Kc)
    patches = jnp.pad(patches, ((0, m_pad - M), (0, kc_pad - Kc)))

    # weight -> (K*K*C_in, C_out), matching the tap-major/channel-minor patch order
    w2d = jnp.transpose(weight_oihw, (2, 3, 1, 0)).reshape(Kc, C_out)
    w2d = jnp.pad(w2d.astype(jnp.bfloat16),
                  ((0, kc_pad - Kc), (0, co_pad - C_out)))

    gamma_pad = jnp.pad(gamma_sel.astype(jnp.float32), (0, co_pad - C_out))
    beta_pad = jnp.pad(beta_sel.astype(jnp.float32), (0, co_pad - C_out))

    # --- phase 1: conv tiles + per-tile partial statistics (fully parallel grid)
    y, part_sum, part_ssq = _conv_phase(patches, w2d, tm)

    # --- tiny cross-tile reduction -> per-channel scale/shift (f32, plain JAX)
    # Padded rows/channels are exactly zero, so dividing by the true M is exact.
    total = jnp.sum(part_sum, axis=(0, 1))
    total_sq = jnp.sum(part_ssq, axis=(0, 1))
    mean = total / M
    var = jnp.maximum(total_sq / M - mean * mean, 0.0)   # biased, training-mode
    inv = lax.rsqrt(var + eps)
    scale = (gamma_pad * inv).reshape(1, co_pad)
    shift = (beta_pad - mean * gamma_pad * inv).reshape(1, co_pad)

    # --- phase 2: normalize + conditional affine (lane-dense, parallel grid) ---
    out2d = _bn_phase(y, scale, shift, tm)

    out = out2d[:M, :C_out].reshape(N, H_out, W_out, C_out)
    return jnp.transpose(out, (0, 3, 1, 2))


class ReLUConvBNPallas:
    """Parameter container mirroring the PyTorch module's __init__ shapes."""

    def __init__(self, C_in, C_out, kernel_size, stride, padding, dilation,
                 affine, track_running_stats=True, num_prev_ops=1,
                 num_prev_nodes=1, is_node_zero=False, *, key):
        self.C_in, self.C_out = C_in, C_out
        self.kernel_size, self.stride = kernel_size, stride
        self.padding, self.dilation = padding, dilation
        self.affine = affine
        self.num_conditions = max(1, num_prev_ops * num_prev_nodes)
        # TODO(synk): track_running_stats is accepted but running_mean/running_var
        # buffers are not maintained; only training-mode batch statistics are used.

        k_w, k_g, k_b = jax.random.split(key, 3)
        # Conv2d weight (C_out, C_in, K, K), no bias.
        self.weight = jax.random.normal(
            k_w, (C_out, C_in, kernel_size, kernel_size), jnp.float32) * 0.1
        # ConditionalBatchNorm2d: one (gamma, beta) pair per condition.
        if affine:
            self.gamma = 1.0 + 0.1 * jax.random.normal(
                k_g, (self.num_conditions, C_out), jnp.float32)
            self.beta = 0.1 * jax.random.normal(
                k_b, (self.num_conditions, C_out), jnp.float32)
        else:
            self.gamma = jnp.ones((self.num_conditions, C_out), jnp.float32)
            self.beta = jnp.zeros((self.num_conditions, C_out), jnp.float32)

    def __call__(self, x_nchw, prev_op_idx=(0,), first_layer=False):
        # TODO(synk): exact ConditionalBatchNorm2d source not provided; the condition
        # selects (averages, if several predecessors) the affine params with shared
        # batch statistics; first_layer falls back to condition 0.
        if first_layer:
            idx = jnp.asarray([0], dtype=jnp.int32)
        else:
            idx = jnp.asarray(list(prev_op_idx), dtype=jnp.int32)
        gamma_sel = jnp.mean(self.gamma[idx], axis=0)
        beta_sel = jnp.mean(self.beta[idx], axis=0)
        return relu_conv_bn(x_nchw, self.weight, gamma_sel, beta_sel,
                            stride=self.stride, padding=self.padding,
                            dilation=self.dilation)


def _reference(x_nchw, weight, gamma_sel, beta_sel, stride, padding, dilation,
               eps=1e-5):
    # Same math with the same bf16 input rounding as the kernel, in plain XLA.
    xr = jnp.maximum(x_nchw, 0.0).astype(jnp.bfloat16).astype(jnp.float32)
    wr = weight.astype(jnp.bfloat16).astype(jnp.float32)
    y = lax.conv_general_dilated(
        xr, wr, window_strides=(stride, stride),
        padding=((padding, padding), (padding, padding)),
        rhs_dilation=(dilation, dilation),
        dimension_numbers=('NCHW', 'OIHW', 'NCHW'))
    mean = jnp.mean(y, axis=(0, 2, 3), keepdims=True)
    var = jnp.mean((y - mean) ** 2, axis=(0, 2, 3), keepdims=True)
    yhat = (y - mean) / jnp.sqrt(var + eps)
    return yhat * gamma_sel.reshape(1, -1, 1, 1) + beta_sel.reshape(1, -1, 1, 1)


if __name__ == "__main__":
    key = jax.random.PRNGKey(0)
    k_x, k_mod = jax.random.split(key)

    N, C_in, C_out, H, W = 2, 4, 8, 16, 16
    x = jax.random.normal(k_x, (N, C_in, H, W), jnp.float32)

    mod = ReLUConvBNPallas(C_in, C_out, kernel_size=3, stride=1, padding=1,
                           dilation=1, affine=True, track_running_stats=True,
                           num_prev_ops=3, num_prev_nodes=2,
                           is_node_zero=False, key=k_mod)

    prev_op_idx = [1]
    out = mod(x, prev_op_idx=prev_op_idx, first_layer=False)
    out = jax.block_until_ready(out)

    # Cross-check against a pure-JAX reference of the same math / precision.
    idx = jnp.asarray(prev_op_idx, dtype=jnp.int32)
    gamma_sel = jnp.mean(mod.gamma[idx], axis=0)
    beta_sel = jnp.mean(mod.beta[idx], axis=0)
    ref = _reference(x, mod.weight, gamma_sel, beta_sel,
                     stride=1, padding=1, dilation=1)

    assert out.shape == (N, C_out, H, W), out.shape
    max_err = float(jnp.max(jnp.abs(out - ref)))
    assert jnp.allclose(out, ref, atol=2e-3, rtol=2e-3), max_err
    print("KERNEL_OK")
</pallas_src>

<mosaic_0001>
module attributes {stable_mosaic.version = 11 : i64} {
  func.func @_conv_stats_kernel(%arg0: i32, %arg1: memref<256x128xbf16, #tpu.memory_space<vmem>>, %arg2: memref<128x128xbf16, #tpu.memory_space<vmem>>, %arg3: memref<256x128xf32, #tpu.memory_space<vmem>>, %arg4: memref<1x1x128xf32, #tpu.memory_space<vmem>>, %arg5: memref<1x1x128xf32, #tpu.memory_space<vmem>>) attributes {dimension_semantics = [#tpu.dimension_semantics<parallel>], iteration_bounds = array<i64: 2>, scalar_prefetch = 0 : i64, scratch_operands = 0 : i64, tpu.core_type = #tpu.core_type<tc>, window_params = [{transform_indices = @transform_0, window_bounds = array<i64: 256, 128>}, {pipeline_mode = #tpu.pipeline_mode<synchronous>, transform_indices = @transform_1, window_bounds = array<i64: 128, 128>}, {transform_indices = @transform_2, window_bounds = array<i64: 256, 128>}, {transform_indices = @transform_3, window_bounds = array<i64: 1, 1, 128>}, {transform_indices = @transform_4, window_bounds = array<i64: 1, 1, 128>}]} {
    %c0 = arith.constant 0 : index
    %c0_0 = arith.constant 0 : index
    %0 = vector.load %arg1[%c0, %c0_0] : memref<256x128xbf16, #tpu.memory_space<vmem>>, vector<256x128xbf16>
    %cst = arith.constant 0.000000e+00 : bf16
    %1 = vector.broadcast %cst : bf16 to vector<256x128xbf16>
    %2 = arith.maximumf %0, %1 : vector<256x128xbf16>
    %c0_1 = arith.constant 0 : index
    %c0_2 = arith.constant 0 : index
    %3 = vector.load %arg2[%c0_1, %c0_2] : memref<128x128xbf16, #tpu.memory_space<vmem>>, vector<128x128xbf16>
    %cst_3 = arith.constant dense<0.000000e+00> : vector<256x128xf32>
    %4 = tpu.matmul %2, %3, %cst_3 {dimension_numbers = #tpu.dot_dimension_numbers<[1], [0], [0], [1], [0, 0, 1, 1], [], []>} : vector<256x128xbf16>, vector<128x128xbf16>, vector<256x128xf32> -> vector<256x128xf32>
    %c0_4 = arith.constant 0 : index
    %c0_5 = arith.constant 0 : index
    %5 = vector.load %arg3[%c0_4, %c0_5] : memref<256x128xf32, #tpu.memory_space<vmem>>, vector<256x128xf32>
    tpu.vector_store %arg3[%c0_4, %c0_5], %4 {strides = array<i32>} : memref<256x128xf32, #tpu.memory_space<vmem>>, vector<256x128xf32>,
    %cst_6 = arith.constant dense<0.000000e+00> : vector<128xf32>
    %6 = vector.multi_reduction <add>, %4, %cst_6 [0] : vector<256x128xf32> to vector<128xf32>
    %7 = vector.shape_cast %6 : vector<128xf32> to vector<1x128xf32>
    %8 = vector.shape_cast %7 : vector<1x128xf32> to vector<1x1x128xf32>
    %c0_7 = arith.constant 0 : index
    %c0_8 = arith.constant 0 : index
    %c0_9 = arith.constant 0 : index
    %9 = vector.load %arg4[%c0_7, %c0_8, %c0_9] : memref<1x1x128xf32, #tpu.memory_space<vmem>>, vector<1x1x128xf32>
    tpu.vector_store %arg4[%c0_7, %c0_8, %c0_9], %8 {strides = array<i32>} : memref<1x1x128xf32, #tpu.memory_space<vmem>>, vector<1x1x128xf32>,
    %10 = arith.mulf %4, %4 : vector<256x128xf32>
    %cst_10 = arith.constant dense<0.000000e+00> : vector<128xf32>
    %11 = vector.multi_reduction <add>, %10, %cst_10 [0] : vector<256x128xf32> to vector<128xf32>
    %12 = vector.shape_cast %11 : vector<128xf32> to vector<1x128xf32>
    %13 = vector.shape_cast %12 : vector<1x128xf32> to vector<1x1x128xf32>
    %c0_11 = arith.constant 0 : index
    %c0_12 = arith.constant 0 : index
    %c0_13 = arith.constant 0 : index
    %14 = vector.load %arg5[%c0_11, %c0_12, %c0_13] : memref<1x1x128xf32, #tpu.memory_space<vmem>>, vector<1x1x128xf32>
    tpu.vector_store %arg5[%c0_11, %c0_12, %c0_13], %13 {strides = array<i32>} : memref<1x1x128xf32, #tpu.memory_space<vmem>>, vector<1x1x128xf32>,
    return
  }
  func.func @transform_0(%arg0: i32) -> (i32, i32) {
    %c0_i32 = arith.constant 0 : i32
    %c0_i32_0 = arith.constant 0 : i32
    return %arg0, %c0_i32 : i32, i32
  }
  func.func @transform_1(%arg0: i32) -> (i32, i32) {
    %c0_i32 = arith.constant 0 : i32
    %c0_i32_0 = arith.constant 0 : i32
    %c0_i32_1 = arith.constant 0 : i32
    return %c0_i32, %c0_i32_0 : i32, i32
  }
  func.func @transform_2(%arg0: i32) -> (i32, i32) {
    %c0_i32 = arith.constant 0 : i32
    %c0_i32_0 = arith.constant 0 : i32
    return %arg0, %c0_i32 : i32, i32
  }
  func.func @transform_3(%arg0: i32) -> (i32, i32, i32) {
    %c0_i32 = arith.constant 0 : i32
    %c0_i32_0 = arith.constant 0 : i32
    %c0_i32_1 = arith.constant 0 : i32
    return %arg0, %c0_i32, %c0_i32_0 : i32, i32, i32
  }
  func.func @transform_4(%arg0: i32) -> (i32, i32, i32) {
    %c0_i32 = arith.constant 0 : i32
    %c0_i32_0 = arith.constant 0 : i32
    %c0_i32_1 = arith.constant 0 : i32
    return %arg0, %c0_i32, %c0_i32_0 : i32, i32, i32
  }
}

module attributes {stable_mosaic.version = 11 : i64} {
  func.func @_bn_apply_kernel(%arg0: i32, %arg1: memref<256x128xf32, #tpu.memory_space<vmem>>, %arg2: memref<1x128xf32, #tpu.memory_space<vmem>>, %arg3: memref<1x128xf32, #tpu.memory_space<vmem>>, %arg4: memref<256x128xf32, #tpu.memory_space<vmem>>) attributes {dimension_semantics = [#tpu.dimension_semantics<parallel>], iteration_bounds = array<i64: 2>, scalar_prefetch = 0 : i64, scratch_operands = 0 : i64, tpu.core_type = #tpu.core_type<tc>, window_params = [{transform_indices = @transform_0, window_bounds = array<i64: 256, 128>}, {pipeline_mode = #tpu.pipeline_mode<synchronous>, transform_indices = @transform_1, window_bounds = array<i64: 1, 128>}, {pipeline_mode = #tpu.pipeline_mode<synchronous>, transform_indices = @transform_2, window_bounds = array<i64: 1, 128>}, {transform_indices = @transform_3, window_bounds = array<i64: 256, 128>}]} {
    %c0 = arith.constant 0 : index
    %c0_0 = arith.constant 0 : index
    %0 = vector.load %arg1[%c0, %c0_0] : memref<256x128xf32, #tpu.memory_space<vmem>>, vector<256x128xf32>
    %c0_1 = arith.constant 0 : index
    %c0_2 = arith.constant 0 : index
    %1 = vector.load %arg2[%c0_1, %c0_2] : memref<1x128xf32, #tpu.memory_space<vmem>>, vector<1x128xf32>
    %2 = vector.broadcast %1 : vector<1x128xf32> to vector<256x128xf32>
    %3 = arith.mulf %0, %2 : vector<256x128xf32>
    %c0_3 = arith.constant 0 : index
    %c0_4 = arith.constant 0 : index
    %4 = vector.load %arg3[%c0_3, %c0_4] : memref<1x128xf32, #tpu.memory_space<vmem>>, vector<1x128xf32>
    %5 = vector.broadcast %4 : vector<1x128xf32> to vector<256x128xf32>
    %6 = arith.addf %3, %5 : vector<256x128xf32>
    %c0_5 = arith.constant 0 : index
    %c0_6 = arith.constant 0 : index
    %7 = vector.load %arg4[%c0_5, %c0_6] : memref<256x128xf32, #tpu.memory_space<vmem>>, vector<256x128xf32>
    tpu.vector_store %arg4[%c0_5, %c0_6], %6 {strides = array<i32>} : memref<256x128xf32, #tpu.memory_space<vmem>>, vector<256x128xf32>,
    return
  }
  func.func @transform_0(%arg0: i32) -> (i32, i32) {
    %c0_i32 = arith.constant 0 : i32
    %c0_i32_0 = arith.constant 0 : i32
    return %arg0, %c0_i32 : i32, i32
  }
  func.func @transform_1(%arg0: i32) -> (i32, i32) {
    %c0_i32 = arith.constant 0 : i32
    %c0_i32_0 = arith.constant 0 : i32
    %c0_i32_1 = arith.constant 0 : i32
    return %c0_i32, %c0_i32_0 : i32, i32
  }
  func.func @transform_2(%arg0: i32) -> (i32, i32) {
    %c0_i32 = arith.constant 0 : i32
    %c0_i32_0 = arith.constant 0 : i32
    %c0_i32_1 = arith.constant 0 : i32
    return %c0_i32, %c0_i32_0 : i32, i32
  }
  func.func @transform_3(%arg0: i32) -> (i32, i32) {
    %c0_i32 = arith.constant 0 : i32
    %c0_i32_0 = arith.constant 0 : i32
    return %arg0, %c0_i32 : i32, i32
  }
}

</mosaic_0001>

<llo_original>
// kernel: relu_conv_bn.3
$region0: #{relu_conv_bn.3}
  #allocation0 [shape = 'u32[]', space=smem, size = 0x4, offset = 0x4, fixed_abs, tag = 'smem constant byte address 0x4 - core index']
  #allocation1 [shape = 'u32[72,128]{1,0:T(1,128)}', space=vmem, size = 0x9000, scoped, tag = 'internal scratch']
  %s0 = inlined_call_operand.vmem [shape: f32[512,128], index: 0, kind: input, shape index: {}]
  %s1 = inlined_call_operand.vmem [shape: f32[1,128], index: 1, kind: input, shape index: {}]
  %s2 = inlined_call_operand.vmem [shape: f32[1,128], index: 2, kind: input, shape index: {}]
  %s3 = inlined_call_operand.vmem [shape: f32[512,128], index: 3, kind: output, shape index: {}]
  %s4 = sld [smem:[#allocation0]]
  $region45: #{relu_conv_bn.3} parent=0
    _
  %s6 = ssub.s32 1, %s4
  %s7 = scalar_select 0, %s6, %s4
  loop: start=0, step=1, limit=4
  $region2: #{relu_conv_bn.3} parent=0 // loop_pre_header
    _
  $region3: #{relu_conv_bn.3} parent=0 // loop_header
    %s9 = sphi 0, %s13
    %p10 = scmp.ge.s32.totalorder %s9, 4
    %s19 = sphi 0, %s21
    %s22 = sphi 0, %s19
    %s23 = sphi 0, %s22
    %s39 = sphi 0, %s23
    %s43 = sphi 0, %s43
    %s45 = sphi 0, %s43
    %s46 = sphi 0, %s45
    %s60 = sphi 0, %s46
    %s64 = sphi 0, %s64
    %s66 = sphi 0, %s64
    %s67 = sphi 0, %s66
    %s81 = sphi 0, %s67
    %s87 = sphi 0, %s89
    %s90 = sphi 0, %s87
    %s91 = sphi 0, %s90
    %s107 = sphi 0, %s91
  $region4: #{relu_conv_bn.3} parent=0 // loop_header_branch
    %12 = sbr.rel (%p10) target = $region8
  $region5: #{relu_conv_bn.3} parent=0 // loop_body
    %s14 = ssub.s32 %s9, 1
    %s15 = ssub.s32 %s9, 2
    %s16 = sadd.s32 %s9, 1
    %s17 = ssub.s32 %s9, %s16
    %p18 = scmp.eq.s32.totalorder %s17, 0
    %s20 = sadd.s32 %s19, 1
    %s21 = scalar_select %p18, %s19, %s20
    %p24 = pneg %p18
    %p25 = scmp.eq.s32.totalorder %s9, 1
    %p26 = por %p24, %p25
    %p27 = scmp.ne.s32.totalorder %s19, %s22
    %p28 = scmp.eq.s32.totalorder %s9, 0
    %p29 = por %p27, %p28
    %p30 = scmp.ne.s32.totalorder %s19, %s22
    %p31 = scmp.eq.s32.totalorder %s14, 1
    %p32 = por %p30, %p31
    %p33 = scmp.ne.s32.totalorder %s22, %s23
    %p34 = scmp.eq.s32.totalorder %s14, 0
    %p35 = por %p33, %p34
    %p36 = scmp.ne.s32.totalorder %s22, %s23
    %p37 = scmp.eq.s32.totalorder %s15, 1
    %p38 = por %p36, %p37
    %p40 = scmp.ne.s32.totalorder %s23, %s39
    %p41 = scmp.eq.s32.totalorder %s15, 0
    %p42 = por %p40, %p41
    %s44 = sadd.s32 %s43, 1
    %p47 = scmp.eq.s32.totalorder %s9, 1
    %p48 = scmp.ne.s32.totalorder %s43, %s45
    %p49 = scmp.eq.s32.totalorder %s9, 0
    %p50 = por %p48, %p49
    %p51 = scmp.ne.s32.totalorder %s43, %s45
    %p52 = scmp.eq.s32.totalorder %s14, 1
    %p53 = por %p51, %p52
    %p54 = scmp.ne.s32.totalorder %s45, %s46
    %p55 = scmp.eq.s32.totalorder %s14, 0
    %p56 = por %p54, %p55
    %p57 = scmp.ne.s32.totalorder %s45, %s46
    %p58 = scmp.eq.s32.totalorder %s15, 1
    %p59 = por %p57, %p58
    %p61 = scmp.ne.s32.totalorder %s46, %s60
    %p62 = scmp.eq.s32.totalorder %s15, 0
    %p63 = por %p61, %p62
    %s65 = sadd.s32 %s64, 1
    %p68 = scmp.eq.s32.totalorder %s9, 1
    %p69 = scmp.ne.s32.totalorder %s64, %s66
    %p70 = scmp.eq.s32.totalorder %s9, 0
    %p71 = por %p69, %p70
    %p72 = scmp.ne.s32.totalorder %s64, %s66
    %p73 = scmp.eq.s32.totalorder %s14, 1
    %p74 = por %p72, %p73
    %p75 = scmp.ne.s32.totalorder %s66, %s67
    %p76 = scmp.eq.s32.totalorder %s14, 0
    %p77 = por %p75, %p76
    %p78 = scmp.ne.s32.totalorder %s66, %s67
    %p79 = scmp.eq.s32.totalorder %s15, 1
    %p80 = por %p78, %p79
    %p82 = scmp.ne.s32.totalorder %s67, %s81
    %p83 = scmp.eq.s32.totalorder %s15, 0
    %p84 = por %p82, %p83
    %s85 = ssub.s32 %s9, %s16
    %p86 = scmp.eq.s32.totalorder %s85, 0
    %s88 = sadd.s32 %s87, 1
    %s89 = scalar_select %p86, %s87, %s88
    %p92 = pneg %p86
    %p93 = scmp.eq.s32.totalorder %s9, 1
    %p94 = por %p92, %p93
    %p95 = scmp.ne.s32.totalorder %s87, %s90
    %p96 = scmp.eq.s32.totalorder %s9, 0
    %p97 = por %p95, %p96
    %p98 = scmp.ne.s32.totalorder %s87, %s90
    %p99 = scmp.eq.s32.totalorder %s14, 1
    %p100 = por %p98, %p99
    %p101 = scmp.ne.s32.totalorder %s90, %s91
    %p102 = scmp.eq.s32.totalorder %s14, 0
    %p103 = por %p101, %p102
    %p104 = scmp.ne.s32.totalorder %s90, %s91
    %p105 = scmp.eq.s32.totalorder %s15, 1
    %p106 = por %p104, %p105
    %p108 = scmp.ne.s32.totalorder %s91, %s107
    %p109 = scmp.eq.s32.totalorder %s15, 0
    %p110 = por %p108, %p109
    %p111 = scmp.le.s32.totalorder 1, %s9
    %p112 = scmp.lt.s32.totalorder %s9, 3
    %p113 = pnand %p111, %p112
    %p114 = pneg %p113
    // Predicated region
    $region9: #{relu_conv_bn.3} parent=5 // pred_check
      _
    $region10: #{relu_conv_bn.3} parent=5 // pred_check_branch
      %116 = sbr.rel (%p113) target = $region12
    $region11: #{relu_conv_bn.3} parent=5 // pred_region
      %s117 = ssub.s32 %s9, 1
      // Predicated region
      $region13: #{relu_conv_bn.3} parent=11 // pred_check
        %p118 = pneg %p56
      $region14: #{relu_conv_bn.3} parent=11 // pred_check_branch
        %120 = sbr.rel (%p118) target = $region16
      $region15: #{relu_conv_bn.3} parent=11 // pred_region
        _
      $region16: #{relu_conv_bn.3} parent=11 // pred_fallthru
        _
      // Predicated region
      $region17: #{relu_conv_bn.3} parent=11 // pred_check
        %p121 = pneg %p77
      $region18: #{relu_conv_bn.3} parent=11 // pred_check_branch
        %123 = sbr.rel (%p121) target = $region20
      $region19: #{relu_conv_bn.3} parent=11 // pred_region
        _
      $region20: #{relu_conv_bn.3} parent=11 // pred_fallthru
        _
    $region12: #{relu_conv_bn.3} parent=5 // pred_fallthru
      _
    %p124 = scmp.lt.s32.totalorder %s9, 2
    // Predicated region
    $region21: #{relu_conv_bn.3} parent=5 // pred_check
      %p125 = pneg %p124
    $region22: #{relu_conv_bn.3} parent=5 // pred_check_branch
      %127 = sbr.rel (%p125) target = $region24
    $region23: #{relu_conv_bn.3} parent=5 // pred_region
      // Predicated region
      $region25: #{relu_conv_bn.3} parent=23 // pred_check
        %p128 = pneg %p29
      $region26: #{relu_conv_bn.3} parent=23 // pred_check_branch
        %130 = sbr.rel (%p128) target = $region28
      $region27: #{relu_conv_bn.3} parent=23 // pred_region
        %s131 = smul.u32 32, %s9
        %p132 = scmp.lt.s32.totalorder %s131, 63
        %s133 = scalar_select %p132, %s131, 63
        %s134 = smul.addr %s133, 8
        %s135 = scalar_lea.vmem %s0, %s134
        %s136 = smul.u32 32, %s9
      $region28: #{relu_conv_bn.3} parent=23 // pred_fallthru
        _
    $region24: #{relu_conv_bn.3} parent=5 // pred_fallthru
      _
    %p137 = scmp.le.s32.totalorder 1, %s9
    %p138 = scmp.lt.s32.totalorder %s9, 3
    %p139 = pnand %p137, %p138
    %p140 = pneg %p139
    // Predicated region
    $region29: #{relu_conv_bn.3} parent=5 // pred_check
      _
    $region30: #{relu_conv_bn.3} parent=5 // pred_check_branch
      %142 = sbr.rel (%p139) target = $region32
    $region31: #{relu_conv_bn.3} parent=5 // pred_region
      %s143 = ssub.s32 %s9, 1
      %s144 = smul.u32 32, %s14
      %p145 = scmp.lt.s32.totalorder %s144, 63
      %s146 = scalar_select %p145, %s144, 63
      %s147 = smul.addr %s146, 8
      %s148 = scalar_lea.vmem %s0, %s147
      %p149 = pneg %p35
      %p150 = pneg %p32
      %p151 = pneg %p56
      %p152 = pneg %p53
      %p153 = pneg %p77
      %p154 = pneg %p74
      %p155 = pneg %p103
      %p156 = pneg %p100
      %s157 = smul.u32 32, %s14
      %p158 = scmp.lt.s32.totalorder %s157, 63
      %s159 = scalar_select %p158, %s157, 63
      %s160 = smul.addr %s159, 8
      %s161 = scalar_lea.vmem %s3, %s160
      %s162 = smul.u32 32, %s14
      %p163 = scmp.lt.s32.totalorder %s162, 63
      %s164 = scalar_select %p163, %s162, 63
      %s165 = smul.addr %s164, 8
      %s166 = scalar_lea.vmem %s0, %s165
      %s167 = smul.u32 32, %s14
      %s168 = smul.u32 32, %s14
      %p169 = scmp.lt.s32.totalorder %s168, 63
      %s170 = scalar_select %p169, %s168, 63
      %s171 = smul.addr %s170, 8
      %s172 = scalar_lea.vmem %s3, %s171
      %s173 = smul.u32 32, %s14
      %v174 = vld [vmem:[%s166] sm:$0xff]
      %v175 = vld [vmem:[%s166 + $0x8] sm:$0xff]
      %v176 = vld [vmem:[%s166 + $0x10] sm:$0xff]
      %v177 = vld [vmem:[%s166 + $0x18] sm:$0xff]
      %v178 = vld [vmem:[%s166 + $0x20] sm:$0xff]
      %v179 = vld [vmem:[%s166 + $0x28] sm:$0xff]
      %v180 = vld [vmem:[%s166 + $0x30] sm:$0xff]
      %v181 = vld [vmem:[%s166 + $0x38] sm:$0xff]
      %v182 = vld [vmem:[%s166 + $0x40] sm:$0xff]
      %v183 = vld [vmem:[%s166 + $0x48] sm:$0xff]
      %v184 = vld [vmem:[%s166 + $0x50] sm:$0xff]
      %v185 = vld [vmem:[%s166 + $0x58] sm:$0xff]
      %v186 = vld [vmem:[%s166 + $0x60] sm:$0xff]
      %v187 = vld [vmem:[%s166 + $0x68] sm:$0xff]
      %v188 = vld [vmem:[%s166 + $0x70] sm:$0xff]
      %v189 = vld [vmem:[%s166 + $0x78] sm:$0xff]
      %v190 = vld [vmem:[%s166 + $0x80] sm:$0xff]
      %v191 = vld [vmem:[%s166 + $0x88] sm:$0xff]
      %v192 = vld [vmem:[%s166 + $0x90] sm:$0xff]
      %v193 = vld [vmem:[%s166 + $0x98] sm:$0xff]
      %v194 = vld [vmem:[%s166 + $0xa0] sm:$0xff]
      %v195 = vld [vmem:[%s166 + $0xa8] sm:$0xff]
      %v196 = vld [vmem:[%s166 + $0xb0] sm:$0xff]
      %v197 = vld [vmem:[%s166 + $0xb8] sm:$0xff]
      %v198 = vld [vmem:[%s166 + $0xc0] sm:$0xff]
      %v199 = vld [vmem:[%s166 + $0xc8] sm:$0xff]
      %v200 = vld [vmem:[%s166 + $0xd0] sm:$0xff]
      %v201 = vld [vmem:[%s166 + $0xd8] sm:$0xff]
      %v202 = vld [vmem:[%s166 + $0xe0] sm:$0xff]
      %v203 = vld [vmem:[%s166 + $0xe8] sm:$0xff]
      %v204 = vld [vmem:[%s166 + $0xf0] sm:$0xff]
      %v205 = vld [vmem:[%s166 + $0xf8] sm:$0xff]
      %v206 = vld [vmem:[%s1] sm:$0x1]
      %v208 = vperm.slane %v206, 0
      %v210 = vmul.f32 %v174, %v208
      %v211 = vmul.f32 %v175, %v208
      %v212 = vmul.f32 %v176, %v208
      %v213 = vmul.f32 %v177, %v208
      %v214 = vmul.f32 %v178, %v208
      %v215 = vmul.f32 %v179, %v208
      %v216 = vmul.f32 %v180, %v208
      %v217 = vmul.f32 %v181, %v208
      %v218 = vmul.f32 %v182, %v208
      %v219 = vmul.f32 %v183, %v208
      %v220 = vmul.f32 %v184, %v208
      %v221 = vmul.f32 %v185, %v208
      %v222 = vmul.f32 %v186, %v208
      %v223 = vmul.f32 %v187, %v208
      %v224 = vmul.f32 %v188, %v208
      %v225 = vmul.f32 %v189, %v208
      %v226 = vmul.f32 %v190, %v208
      %v227 = vmul.f32 %v191, %v208
      %v228 = vmul.f32 %v192, %v208
      %v229 = vmul.f32 %v193, %v208
      %v230 = vmul.f32 %v194, %v208
      %v231 = vmul.f32 %v195, %v208
      %v232 = vmul.f32 %v196, %v208
      %v233 = vmul.f32 %v197, %v208
      %v234 = vmul.f32 %v198, %v208
      %v235 = vmul.f32 %v199, %v208
      %v236 = vmul.f32 %v200, %v208
      %v237 = vmul.f32 %v201, %v208
      %v238 = vmul.f32 %v202, %v208
      %v239 = vmul.f32 %v203, %v208
      %v240 = vmul.f32 %v204, %v208
      %v241 = vmul.f32 %v205, %v208
      %v242 = vld [vmem:[%s2] sm:$0x1]
      %v244 = vperm.slane %v242, 0
      %v246 = vadd.f32 %v210, %v244
      %v247 = vadd.f32 %v211, %v244
      %v248 = vadd.f32 %v212, %v244
      %v249 = vadd.f32 %v213, %v244
      %v250 = vadd.f32 %v214, %v244
      %v251 = vadd.f32 %v215, %v244
      %v252 = vadd.f32 %v216, %v244
      %v253 = vadd.f32 %v217, %v244
      %v254 = vadd.f32 %v218, %v244
      %v255 = vadd.f32 %v219, %v244
      %v256 = vadd.f32 %v220, %v244
      %v257 = vadd.f32 %v221, %v244
      %v258 = vadd.f32 %v222, %v244
      %v259 = vadd.f32 %v223, %v244
      %v260 = vadd.f32 %v224, %v244
      %v261 = vadd.f32 %v225, %v244
      %v262 = vadd.f32 %v226, %v244
      %v263 = vadd.f32 %v227, %v244
      %v264 = vadd.f32 %v228, %v244
      %v265 = vadd.f32 %v229, %v244
      %v266 = vadd.f32 %v230, %v244
      %v267 = vadd.f32 %v231, %v244
      %v268 = vadd.f32 %v232, %v244
      %v269 = vadd.f32 %v233, %v244
      %v270 = vadd.f32 %v234, %v244
      %v271 = vadd.f32 %v235, %v244
      %v272 = vadd.f32 %v236, %v244
      %v273 = vadd.f32 %v237, %v244
      %v274 = vadd.f32 %v238, %v244
      %v275 = vadd.f32 %v239, %v244
      %v276 = vadd.f32 %v240, %v244
      %v277 = vadd.f32 %v241, %v244
      %278 = vst [vmem:[%s172] sm:$0xff] %v246
      %279 = vst [vmem:[%s172 + $0x8] sm:$0xff] %v247
      %280 = vst [vmem:[%s172 + $0x10] sm:$0xff] %v248
      %281 = vst [vmem:[%s172 + $0x18] sm:$0xff] %v249
      %282 = vst [vmem:[%s172 + $0x20] sm:$0xff] %v250
      %283 = vst [vmem:[%s172 + $0x28] sm:$0xff] %v251
      %284 = vst [vmem:[%s172 + $0x30] sm:$0xff] %v252
      %285 = vst [vmem:[%s172 + $0x38] sm:$0xff] %v253
      %286 = vst [vmem:[%s172 + $0x40] sm:$0xff] %v254
      %287 = vst [vmem:[%s172 + $0x48] sm:$0xff] %v255
      %288 = vst [vmem:[%s172 + $0x50] sm:$0xff] %v256
      %289 = vst [vmem:[%s172 + $0x58] sm:$0xff] %v257
      %290 = vst [vmem:[%s172 + $0x60] sm:$0xff] %v258
      %291 = vst [vmem:[%s172 + $0x68] sm:$0xff] %v259
      %292 = vst [vmem:[%s172 + $0x70] sm:$0xff] %v260
      %293 = vst [vmem:[%s172 + $0x78] sm:$0xff] %v261
      %294 = vst [vmem:[%s172 + $0x80] sm:$0xff] %v262
      %295 = vst [vmem:[%s172 + $0x88] sm:$0xff] %v263
      %296 = vst [vmem:[%s172 + $0x90] sm:$0xff] %v264
      %297 = vst [vmem:[%s172 + $0x98] sm:$0xff] %v265
      %298 = vst [vmem:[%s172 + $0xa0] sm:$0xff] %v266
      %299 = vst [vmem:[%s172 + $0xa8] sm:$0xff] %v267
      %300 = vst [vmem:[%s172 + $0xb0] sm:$0xff] %v268
      %301 = vst [vmem:[%s172 + $0xb8] sm:$0xff] %v269
      %302 = vst [vmem:[%s172 + $0xc0] sm:$0xff] %v270
      %303 = vst [vmem:[%s172 + $0xc8] sm:$0xff] %v271
      %304 = vst [vmem:[%s172 + $0xd0] sm:$0xff] %v272
      %305 = vst [vmem:[%s172 + $0xd8] sm:$0xff] %v273
      %306 = vst [vmem:[%s172 + $0xe0] sm:$0xff] %v274
      %307 = vst [vmem:[%s172 + $0xe8] sm:$0xff] %v275
      %308 = vst [vmem:[%s172 + $0xf0] sm:$0xff] %v276
      %309 = vst [vmem:[%s172 + $0xf8] sm:$0xff] %v277
      %s310 = smul.u32 32, %s14
      %p311 = scmp.lt.s32.totalorder %s310, 63
      %s312 = scalar_select %p311, %s310, 63
      %s313 = smul.addr %s312, 8
      %s314 = scalar_lea.vmem %s3, %s313
      // Predicated region
      $region33: #{relu_conv_bn.3} parent=31 // pred_check
        %p315 = pneg %p100
      $region34: #{relu_conv_bn.3} parent=31 // pred_check_branch
        %317 = sbr.rel (%p315) target = $region36
      $region35: #{relu_conv_bn.3} parent=31 // pred_region
        %s318 = smul.u32 32, %s14
      $region36: #{relu_conv_bn.3} parent=31 // pred_fallthru
        _
    $region32: #{relu_conv_bn.3} parent=5 // pred_fallthru
      _
    %p319 = scmp.le.s32.totalorder 2, %s9
    // Predicated region
    $region37: #{relu_conv_bn.3} parent=5 // pred_check
      %p320 = pneg %p319
    $region38: #{relu_conv_bn.3} parent=5 // pred_check_branch
      %322 = sbr.rel (%p320) target = $region40
    $region39: #{relu_conv_bn.3} parent=5 // pred_region
      %s323 = ssub.s32 %s9, 2
      // Predicated region
      $region41: #{relu_conv_bn.3} parent=39 // pred_check
        %p324 = pneg %p106
      $region42: #{relu_conv_bn.3} parent=39 // pred_check_branch
        %326 = sbr.rel (%p324) target = $region44
      $region43: #{relu_conv_bn.3} parent=39 // pred_region
        %s327 = smul.u32 32, %s15
        %p328 = scmp.lt.s32.totalorder %s327, 63
        %s329 = scalar_select %p328, %s327, 63
        %s330 = smul.addr %s329, 8
        %s331 = scalar_lea.vmem %s3, %s330
      $region44: #{relu_conv_bn.3} parent=39 // pred_fallthru
        _
    $region40: #{relu_conv_bn.3} parent=5 // pred_fallthru
      _
  $region6: #{relu_conv_bn.3} parent=0 // loop_footer
    %s13 = sadd.s32 1, %s9
  $region7: #{relu_conv_bn.3} parent=0 // loop_footer_branch
    %8 = sbr.rel target = $region3
  $region8: #{relu_conv_bn.3} parent=0 // loop_exit
    _

// kernel: relu_conv_bn.2
$region0: #{relu_conv_bn.2}
  #allocation0 [shape = 'u32[]', space=smem, size = 0x4, offset = 0x4, fixed_abs, tag = 'smem constant byte address 0x4 - core index']
  #allocation1 [shape = 'u32[72,128]{1,0:T(1,128)}', space=vmem, size = 0x9000, scoped, tag = 'internal scratch']
  %s0 = inlined_call_operand.vmem [shape: bf16[512,128], index: 0, kind: input, shape index: {}]
  %s1 = inlined_call_operand.vmem [shape: bf16[128,128], index: 1, kind: input, shape index: {}]
  %s2 = inlined_call_operand.vmem [shape: f32[512,128], index: 2, kind: output, shape index: {0}]
  %s3 = inlined_call_operand.vmem [shape: f32[2,1,128], index: 3, kind: output, shape index: {1}]
  %s4 = inlined_call_operand.vmem [shape: f32[2,1,128], index: 4, kind: output, shape index: {2}]
  %5 = xla_tuple %s2, %s3, %s4
  %s6 = sld [smem:[#allocation0]]
  $region57: #{relu_conv_bn.2} parent=0
    _
  %s8 = ssub.s32 1, %s6
  %s9 = scalar_select 0, %s8, %s6
  loop: start=0, step=1, limit=4
  $region2: #{relu_conv_bn.2} parent=0 // loop_pre_header
    _
  $region3: #{relu_conv_bn.2} parent=0 // loop_header
    %s11 = sphi 0, %s15
    %p12 = scmp.ge.s32.totalorder %s11, 4
    %s21 = sphi 0, %s23
    %s24 = sphi 0, %s21
    %s25 = sphi 0, %s24
    %s41 = sphi 0, %s25
    %s45 = sphi 0, %s45
    %s47 = sphi 0, %s45
    %s48 = sphi 0, %s47
    %s62 = sphi 0, %s48
    %s68 = sphi 0, %s70
    %s71 = sphi 0, %s68
    %s72 = sphi 0, %s71
    %s88 = sphi 0, %s72
    %s94 = sphi 0, %s96
    %s97 = sphi 0, %s94
    %s98 = sphi 0, %s97
    %s114 = sphi 0, %s98
    %s120 = sphi 0, %s122
    %s123 = sphi 0, %s120
    %s124 = sphi 0, %s123
    %s140 = sphi 0, %s124
  $region4: #{relu_conv_bn.2} parent=0 // loop_header_branch
    %14 = sbr.rel (%p12) target = $region8
  $region5: #{relu_conv_bn.2} parent=0 // loop_body
    %s16 = ssub.s32 %s11, 1
    %s17 = ssub.s32 %s11, 2
    %s18 = sadd.s32 %s11, 1
    %s19 = ssub.s32 %s11, %s18
    %p20 = scmp.eq.s32.totalorder %s19, 0
    %s22 = sadd.s32 %s21, 1
    %s23 = scalar_select %p20, %s21, %s22
    %p26 = pneg %p20
    %p27 = scmp.eq.s32.totalorder %s11, 1
    %p28 = por %p26, %p27
    %p29 = scmp.ne.s32.totalorder %s21, %s24
    %p30 = scmp.eq.s32.totalorder %s11, 0
    %p31 = por %p29, %p30
    %p32 = scmp.ne.s32.totalorder %s21, %s24
    %p33 = scmp.eq.s32.totalorder %s16, 1
    %p34 = por %p32, %p33
    %p35 = scmp.ne.s32.totalorder %s24, %s25
    %p36 = scmp.eq.s32.totalorder %s16, 0
    %p37 = por %p35, %p36
    %p38 = scmp.ne.s32.totalorder %s24, %s25
    %p39 = scmp.eq.s32.totalorder %s17, 1
    %p40 = por %p38, %p39
    %p42 = scmp.ne.s32.totalorder %s25, %s41
    %p43 = scmp.eq.s32.totalorder %s17, 0
    %p44 = por %p42, %p43
    %s46 = sadd.s32 %s45, 1
    %p49 = scmp.eq.s32.totalorder %s11, 1
    %p50 = scmp.ne.s32.totalorder %s45, %s47
    %p51 = scmp.eq.s32.totalorder %s11, 0
    %p52 = por %p50, %p51
    %p53 = scmp.ne.s32.totalorder %s45, %s47
    %p54 = scmp.eq.s32.totalorder %s16, 1
    %p55 = por %p53, %p54
    %p56 = scmp.ne.s32.totalorder %s47, %s48
    %p57 = scmp.eq.s32.totalorder %s16, 0
    %p58 = por %p56, %p57
    %p59 = scmp.ne.s32.totalorder %s47, %s48
    %p60 = scmp.eq.s32.totalorder %s17, 1
    %p61 = por %p59, %p60
    %p63 = scmp.ne.s32.totalorder %s48, %s62
    %p64 = scmp.eq.s32.totalorder %s17, 0
    %p65 = por %p63, %p64
    %s66 = ssub.s32 %s11, %s18
    %p67 = scmp.eq.s32.totalorder %s66, 0
    %s69 = sadd.s32 %s68, 1
    %s70 = scalar_select %p67, %s68, %s69
    %p73 = pneg %p67
    %p74 = scmp.eq.s32.totalorder %s11, 1
    %p75 = por %p73, %p74
    %p76 = scmp.ne.s32.totalorder %s68, %s71
    %p77 = scmp.eq.s32.totalorder %s11, 0
    %p78 = por %p76, %p77
    %p79 = scmp.ne.s32.totalorder %s68, %s71
    %p80 = scmp.eq.s32.totalorder %s16, 1
    %p81 = por %p79, %p80
    %p82 = scmp.ne.s32.totalorder %s71, %s72
    %p83 = scmp.eq.s32.totalorder %s16, 0
    %p84 = por %p82, %p83
    %p85 = scmp.ne.s32.totalorder %s71, %s72
    %p86 = scmp.eq.s32.totalorder %s17, 1
    %p87 = por %p85, %p86
    %p89 = scmp.ne.s32.totalorder %s72, %s88
    %p90 = scmp.eq.s32.totalorder %s17, 0
    %p91 = por %p89, %p90
    %s92 = ssub.s32 %s11, %s18
    %p93 = scmp.eq.s32.totalorder %s92, 0
    %s95 = sadd.s32 %s94, 1
    %s96 = scalar_select %p93, %s94, %s95
    %p99 = pneg %p93
    %p100 = scmp.eq.s32.totalorder %s11, 1
    %p101 = por %p99, %p100
    %p102 = scmp.ne.s32.totalorder %s94, %s97
    %p103 = scmp.eq.s32.totalorder %s11, 0
    %p104 = por %p102, %p103
    %p105 = scmp.ne.s32.totalorder %s94, %s97
    %p106 = scmp.eq.s32.totalorder %s16, 1
    %p107 = por %p105, %p106
    %p108 = scmp.ne.s32.totalorder %s97, %s98
    %p109 = scmp.eq.s32.totalorder %s16, 0
    %p110 = por %p108, %p109
    %p111 = scmp.ne.s32.totalorder %s97, %s98
    %p112 = scmp.eq.s32.totalorder %s17, 1
    %p113 = por %p111, %p112
    %p115 = scmp.ne.s32.totalorder %s98, %s114
    %p116 = scmp.eq.s32.totalorder %s17, 0
    %p117 = por %p115, %p116
    %s118 = ssub.s32 %s11, %s18
    %p119 = scmp.eq.s32.totalorder %s118, 0
    %s121 = sadd.s32 %s120, 1
    %s122 = scalar_select %p119, %s120, %s121
    %p125 = pneg %p119
    %p126 = scmp.eq.s32.totalorder %s11, 1
    %p127 = por %p125, %p126
    %p128 = scmp.ne.s32.totalorder %s120, %s123
    %p129 = scmp.eq.s32.totalorder %s11, 0
    %p130 = por %p128, %p129
    %p131 = scmp.ne.s32.totalorder %s120, %s123
    %p132 = scmp.eq.s32.totalorder %s16, 1
    %p133 = por %p131, %p132
    %p134 = scmp.ne.s32.totalorder %s123, %s124
    %p135 = scmp.eq.s32.totalorder %s16, 0
    %p136 = por %p134, %p135
    %p137 = scmp.ne.s32.totalorder %s123, %s124
    %p138 = scmp.eq.s32.totalorder %s17, 1
    %p139 = por %p137, %p138
    %p141 = scmp.ne.s32.totalorder %s124, %s140
    %p142 = scmp.eq.s32.totalorder %s17, 0
    %p143 = por %p141, %p142
    %p144 = scmp.le.s32.totalorder 1, %s11
    %p145 = scmp.lt.s32.totalorder %s11, 3
    %p146 = pnand %p144, %p145
    %p147 = pneg %p146
    // Predicated region
    $region9: #{relu_conv_bn.2} parent=5 // pred_check
      _
    $region10: #{relu_conv_bn.2} parent=5 // pred_check_branch
      %149 = sbr.rel (%p146) target = $region12
    $region11: #{relu_conv_bn.2} parent=5 // pred_region
      %s150 = ssub.s32 %s11, 1
      // Predicated region
      $region13: #{relu_conv_bn.2} parent=11 // pred_check
        %p151 = pneg %p58
      $region14: #{relu_conv_bn.2} parent=11 // pred_check_branch
        %153 = sbr.rel (%p151) target = $region16
      $region15: #{relu_conv_bn.2} parent=11 // pred_region
        _
      $region16: #{relu_conv_bn.2} parent=11 // pred_fallthru
        _
    $region12: #{relu_conv_bn.2} parent=5 // pred_fallthru
      _
    %p154 = scmp.lt.s32.totalorder %s11, 2
    // Predicated region
    $region17: #{relu_conv_bn.2} parent=5 // pred_check
      %p155 = pneg %p154
    $region18: #{relu_conv_bn.2} parent=5 // pred_check_branch
      %157 = sbr.rel (%p155) target = $region20
    $region19: #{relu_conv_bn.2} parent=5 // pred_region
      // Predicated region
      $region21: #{relu_conv_bn.2} parent=19 // pred_check
        %p158 = pneg %p31
      $region22: #{relu_conv_bn.2} parent=19 // pred_check_branch
        %160 = sbr.rel (%p158) target = $region24
      $region23: #{relu_conv_bn.2} parent=19 // pred_region
        %s161 = smul.u32 32, %s11
        %p162 = scmp.lt.s32.totalorder %s161, 63
        %s163 = scalar_select %p162, %s161, 63
        %s164 = smul.addr %s163, 4
        %s165 = scalar_lea.vmem %s0, %s164
        %s166 = smul.u32 32, %s11
      $region24: #{relu_conv_bn.2} parent=19 // pred_fallthru
        _
    $region20: #{relu_conv_bn.2} parent=5 // pred_fallthru
      _
    %p167 = scmp.le.s32.totalorder 1, %s11
    %p168 = scmp.lt.s32.totalorder %s11, 3
    %p169 = pnand %p167, %p168
    %p170 = pneg %p169
    // Predicated region
    $region25: #{relu_conv_bn.2} parent=5 // pred_check
      _
    $region26: #{relu_conv_bn.2} parent=5 // pred_check_branch
      %172 = sbr.rel (%p169) target = $region28
    $region27: #{relu_conv_bn.2} parent=5 // pred_region
      %s173 = ssub.s32 %s11, 1
      %s174 = smul.u32 32, %s16
      %p175 = scmp.lt.s32.totalorder %s174, 63
      %s176 = scalar_select %p175, %s174, 63
      %s177 = smul.addr %s176, 4
      %s178 = scalar_lea.vmem %s0, %s177
      %p179 = pneg %p37
      %p180 = pneg %p34
      %p181 = pneg %p58
      %p182 = pneg %p55
      %p183 = pneg %p84
      %p184 = pneg %p81
      %s185 = smul.u32 32, %s16
      %p186 = scmp.lt.s32.totalorder %s185, 63
      %s187 = scalar_select %p186, %s185, 63
      %s188 = smul.addr %s187, 8
      %s189 = scalar_lea.vmem %s2, %s188
      %p190 = pneg %p110
      %p191 = pneg %p107
      %p192 = scmp.lt.s32.totalorder %s16, 1
      %s193 = scalar_select %p192, %s16, 1
      %s194 = scalar_lea.vmem %s3, %s193
      %p195 = pneg %p136
      %p196 = pneg %p133
      %p197 = scmp.lt.s32.totalorder %s16, 1
      %s198 = scalar_select %p197, %s16, 1
      %s199 = scalar_lea.vmem %s4, %s198
      %s200 = smul.u32 32, %s16
      %p201 = scmp.lt.s32.totalorder %s200, 63
      %s202 = scalar_select %p201, %s200, 63
      %s203 = smul.addr %s202, 4
      %s204 = scalar_lea.vmem %s0, %s203
      %s205 = smul.u32 32, %s16
      %s206 = smul.u32 32, %s16
      %p207 = scmp.lt.s32.totalorder %s206, 63
      %s208 = scalar_select %p207, %s206, 63
      %s209 = smul.addr %s208, 8
      %s210 = scalar_lea.vmem %s2, %s209
      %s211 = smul.u32 32, %s16
      %p212 = scmp.lt.s32.totalorder %s16, 1
      %s213 = scalar_select %p212, %s16, 1
      %s214 = scalar_lea.vmem %s3, %s213
      %p215 = scmp.lt.s32.totalorder %s16, 1
      %s216 = scalar_select %p215, %s16, 1
      %s217 = scalar_lea.vmem %s4, %s216
      %v218 = vld [vmem:[%s204] sm:$0xf]
      %v219 = vld [vmem:[%s204 + $0x4] sm:$0xf]
      %v220 = vld [vmem:[%s204 + $0x8] sm:$0xf]
      %v221 = vld [vmem:[%s204 + $0xc] sm:$0xf]
      %v222 = vld [vmem:[%s204 + $0x10] sm:$0xf]
      %v223 = vld [vmem:[%s204 + $0x14] sm:$0xf]
      %v224 = vld [vmem:[%s204 + $0x18] sm:$0xf]
      %v225 = vld [vmem:[%s204 + $0x1c] sm:$0xf]
      %v226 = vld [vmem:[%s204 + $0x20] sm:$0xf]
      %v227 = vld [vmem:[%s204 + $0x24] sm:$0xf]
      %v228 = vld [vmem:[%s204 + $0x28] sm:$0xf]
      %v229 = vld [vmem:[%s204 + $0x2c] sm:$0xf]
      %v230 = vld [vmem:[%s204 + $0x30] sm:$0xf]
      %v231 = vld [vmem:[%s204 + $0x34] sm:$0xf]
      %v232 = vld [vmem:[%s204 + $0x38] sm:$0xf]
      %v233 = vld [vmem:[%s204 + $0x3c] sm:$0xf]
      %v234 = vld [vmem:[%s204 + $0x40] sm:$0xf]
      %v235 = vld [vmem:[%s204 + $0x44] sm:$0xf]
      %v236 = vld [vmem:[%s204 + $0x48] sm:$0xf]
      %v237 = vld [vmem:[%s204 + $0x4c] sm:$0xf]
      %v238 = vld [vmem:[%s204 + $0x50] sm:$0xf]
      %v239 = vld [vmem:[%s204 + $0x54] sm:$0xf]
      %v240 = vld [vmem:[%s204 + $0x58] sm:$0xf]
      %v241 = vld [vmem:[%s204 + $0x5c] sm:$0xf]
      %v242 = vld [vmem:[%s204 + $0x60] sm:$0xf]
      %v243 = vld [vmem:[%s204 + $0x64] sm:$0xf]
      %v244 = vld [vmem:[%s204 + $0x68] sm:$0xf]
      %v245 = vld [vmem:[%s204 + $0x6c] sm:$0xf]
      %v246 = vld [vmem:[%s204 + $0x70] sm:$0xf]
      %v247 = vld [vmem:[%s204 + $0x74] sm:$0xf]
      %v248 = vld [vmem:[%s204 + $0x78] sm:$0xf]
      %v249 = vld [vmem:[%s204 + $0x7c] sm:$0xf]
      %v250 = vunpack.c.l.bf16 %v218
      %v251 = vunpack.c.l.bf16 %v219
      %v252 = vunpack.c.l.bf16 %v220
      %v253 = vunpack.c.l.bf16 %v221
      %v254 = vunpack.c.l.bf16 %v222
      %v255 = vunpack.c.l.bf16 %v223
      %v256 = vunpack.c.l.bf16 %v224
      %v257 = vunpack.c.l.bf16 %v225
      %v258 = vunpack.c.l.bf16 %v226
      %v259 = vunpack.c.l.bf16 %v227
      %v260 = vunpack.c.l.bf16 %v228
      %v261 = vunpack.c.l.bf16 %v229
      %v262 = vunpack.c.l.bf16 %v230
      %v263 = vunpack.c.l.bf16 %v231
      %v264 = vunpack.c.l.bf16 %v232
      %v265 = vunpack.c.l.bf16 %v233
      %v266 = vunpack.c.l.bf16 %v234
      %v267 = vunpack.c.l.bf16 %v235
      %v268 = vunpack.c.l.bf16 %v236
      %v269 = vunpack.c.l.bf16 %v237
      %v270 = vunpack.c.l.bf16 %v238
      %v271 = vunpack.c.l.bf16 %v239
      %v272 = vunpack.c.l.bf16 %v240
      %v273 = vunpack.c.l.bf16 %v241
      %v274 = vunpack.c.l.bf16 %v242
      %v275 = vunpack.c.l.bf16 %v243
      %v276 = vunpack.c.l.bf16 %v244
      %v277 = vunpack.c.l.bf16 %v245
      %v278 = vunpack.c.l.bf16 %v246
      %v279 = vunpack.c.l.bf16 %v247
      %v280 = vunpack.c.l.bf16 %v248
      %v281 = vunpack.c.l.bf16 %v249
      %v282 = vmax.f32 %v250, 0.0
      %v283 = vmax.f32 %v251, 0.0
      %v284 = vmax.f32 %v252, 0.0
      %v285 = vmax.f32 %v253, 0.0
      %v286 = vmax.f32 %v254, 0.0
      %v287 = vmax.f32 %v255, 0.0
      %v288 = vmax.f32 %v256, 0.0
      %v289 = vmax.f32 %v257, 0.0
      %v290 = vmax.f32 %v258, 0.0
      %v291 = vmax.f32 %v259, 0.0
      %v292 = vmax.f32 %v260, 0.0
      %v293 = vmax.f32 %v261, 0.0
      %v294 = vmax.f32 %v262, 0.0
      %v295 = vmax.f32 %v263, 0.0
      %v296 = vmax.f32 %v264, 0.0
      %v297 = vmax.f32 %v265, 0.0
      %v298 = vmax.f32 %v266, 0.0
      %v299 = vmax.f32 %v267, 0.0
      %v300 = vmax.f32 %v268, 0.0
      %v301 = vmax.f32 %v269, 0.0
      %v302 = vmax.f32 %v270, 0.0
      %v303 = vmax.f32 %v271, 0.0
      %v304 = vmax.f32 %v272, 0.0
      %v305 = vmax.f32 %v273, 0.0
      %v306 = vmax.f32 %v274, 0.0
      %v307 = vmax.f32 %v275, 0.0
      %v308 = vmax.f32 %v276, 0.0
      %v309 = vmax.f32 %v277, 0.0
      %v310 = vmax.f32 %v278, 0.0
      %v311 = vmax.f32 %v279, 0.0
      %v312 = vmax.f32 %v280, 0.0
      %v313 = vmax.f32 %v281, 0.0
      %v314 = vpack.c.bf16 %v283, %v282
      %v315 = vpack.c.bf16 %v285, %v284
      %v316 = vpack.c.bf16 %v287, %v286
      %v317 = vpack.c.bf16 %v289, %v288
      %v318 = vpack.c.bf16 %v291, %v290
      %v319 = vpack.c.bf16 %v293, %v292
      %v320 = vpack.c.bf16 %v295, %v294
      %v321 = vpack.c.bf16 %v297, %v296
      %v322 = vpack.c.bf16 %v299, %v298
      %v323 = vpack.c.bf16 %v301, %v300
      %v324 = vpack.c.bf16 %v303, %v302
      %v325 = vpack.c.bf16 %v305, %v304
      %v326 = vpack.c.bf16 %v307, %v306
      %v327 = vpack.c.bf16 %v309, %v308
      %v328 = vpack.c.bf16 %v311, %v310
      %v329 = vpack.c.bf16 %v313, %v312
      %v330 = vld [vmem:[%s1] sm:$0xf]
      %v331 = vld [vmem:[%s1 + $0x4] sm:$0xf]
      %v332 = vld [vmem:[%s1 + $0x8] sm:$0xf]
      %v333 = vld [vmem:[%s1 + $0xc] sm:$0xf]
      %v334 = vld [vmem:[%s1 + $0x10] sm:$0xf]
      %v335 = vld [vmem:[%s1 + $0x14] sm:$0xf]
      %v336 = vld [vmem:[%s1 + $0x18] sm:$0xf]
      %v337 = vld [vmem:[%s1 + $0x1c] sm:$0xf]
      %v338 = vld [vmem:[%s1 + $0x20] sm:$0xf]
      %v339 = vld [vmem:[%s1 + $0x24] sm:$0xf]
      %v340 = vld [vmem:[%s1 + $0x28] sm:$0xf]
      %v341 = vld [vmem:[%s1 + $0x2c] sm:$0xf]
      %v342 = vld [vmem:[%s1 + $0x30] sm:$0xf]
      %v343 = vld [vmem:[%s1 + $0x34] sm:$0xf]
      %v344 = vld [vmem:[%s1 + $0x38] sm:$0xf]
      %v345 = vld [vmem:[%s1 + $0x3c] sm:$0xf]
      %v362 = vunpack.c.l.b16 %v330
      %v363 = vunpack.c.l.b16 %v331
      %v364 = vunpack.c.l.b16 %v332
      %v365 = vunpack.c.l.b16 %v333
      %v366 = vunpack.c.l.b16 %v334
      %v367 = vunpack.c.l.b16 %v335
      %v368 = vunpack.c.l.b16 %v336
      %v369 = vunpack.c.l.b16 %v337
      %v370 = vunpack.c.l.b16 %v338
      %v371 = vunpack.c.l.b16 %v339
      %v372 = vunpack.c.l.b16 %v340
      %v373 = vunpack.c.l.b16 %v341
      %v374 = vunpack.c.l.b16 %v342
      %v375 = vunpack.c.l.b16 %v343
      %v376 = vunpack.c.l.b16 %v344
      %v377 = vunpack.c.l.b16 %v345
      %v378 = vpack.c.b16 %v363, %v362
      %v379 = vpack.c.b16 %v365, %v364
      %v380 = vpack.c.b16 %v367, %v366
      %v381 = vpack.c.b16 %v369, %v368
      %v382 = vpack.c.b16 %v371, %v370
      %v383 = vpack.c.b16 %v373, %v372
      %v384 = vpack.c.b16 %v375, %v374
      %v385 = vpack.c.b16 %v377, %v376
      %394 = vmatpush.bf16.msra.mxu0 %v385
      %395 = vmatpush.bf16.msra.mxu0 %v384
      %396 = vmatpush.bf16.msra.mxu0 %v383
      %397 = vmatpush.bf16.msra.mxu0 %v382
      %398 = vmatpush.bf16.msra.mxu0 %v381
      %399 = vmatpush.bf16.msra.mxu0 %v380
      %400 = vmatpush.bf16.msra.mxu0 %v379
      %401 = vmatpush.bf16.msra.mxu0 %v378
      %402 = vmatmul.bf16.gmra.mxu0 %v314
      %v403 = vpop.f32.mrf.mxu0
      %v404 = vadd.f32 0.0, %v403
      %v405 = vpop.f32.mrf.mxu0
      %v406 = vadd.f32 0.0, %v405
      %407 = vmatmul.bf16.gmra.mxu0 %v315
      %v408 = vpop.f32.mrf.mxu0
      %v409 = vadd.f32 0.0, %v408
      %v410 = vpop.f32.mrf.mxu0
      %v411 = vadd.f32 0.0, %v410
      %412 = vmatmul.bf16.gmra.mxu0 %v316
      %v413 = vpop.f32.mrf.mxu0
      %v414 = vadd.f32 0.0, %v413
      %v415 = vpop.f32.mrf.mxu0
      %v416 = vadd.f32 0.0, %v415
      %417 = vmatmul.bf16.gmra.mxu0 %v317
      %v418 = vpop.f32.mrf.mxu0
      %v419 = vadd.f32 0.0, %v418
      %v420 = vpop.f32.mrf.mxu0
      %v421 = vadd.f32 0.0, %v420
      %422 = vmatmul.bf16.gmra.mxu0 %v318
      %v423 = vpop.f32.mrf.mxu0
      %v424 = vadd.f32 0.0, %v423
      %v425 = vpop.f32.mrf.mxu0
      %v426 = vadd.f32 0.0, %v425
      %427 = vmatmul.bf16.gmra.mxu0 %v319
      %v428 = vpop.f32.mrf.mxu0
      %v429 = vadd.f32 0.0, %v428
      %v430 = vpop.f32.mrf.mxu0
      %v431 = vadd.f32 0.0, %v430
      %432 = vmatmul.bf16.gmra.mxu0 %v320
      %v433 = vpop.f32.mrf.mxu0
      %v434 = vadd.f32 0.0, %v433
      %v435 = vpop.f32.mrf.mxu0
      %v436 = vadd.f32 0.0, %v435
      %437 = vmatmul.bf16.gmra.mxu0 %v321
      %v438 = vpop.f32.mrf.mxu0
      %v439 = vadd.f32 0.0, %v438
      %v440 = vpop.f32.mrf.mxu0
      %v441 = vadd.f32 0.0, %v440
      %442 = vmatmul.bf16.gmra.mxu0 %v322
      %v443 = vpop.f32.mrf.mxu0
      %v444 = vadd.f32 0.0, %v443
      %v445 = vpop.f32.mrf.mxu0
      %v446 = vadd.f32 0.0, %v445
      %447 = vmatmul.bf16.gmra.mxu0 %v323
      %v448 = vpop.f32.mrf.mxu0
      %v449 = vadd.f32 0.0, %v448
      %v450 = vpop.f32.mrf.mxu0
      %v451 = vadd.f32 0.0, %v450
      %452 = vmatmul.bf16.gmra.mxu0 %v324
      %v453 = vpop.f32.mrf.mxu0
      %v454 = vadd.f32 0.0, %v453
      %v455 = vpop.f32.mrf.mxu0
      %v456 = vadd.f32 0.0, %v455
      %457 = vmatmul.bf16.gmra.mxu0 %v325
      %v458 = vpop.f32.mrf.mxu0
      %v459 = vadd.f32 0.0, %v458
      %v460 = vpop.f32.mrf.mxu0
      %v461 = vadd.f32 0.0, %v460
      %462 = vmatmul.bf16.gmra.mxu0 %v326
      %v463 = vpop.f32.mrf.mxu0
      %v464 = vadd.f32 0.0, %v463
      %v465 = vpop.f32.mrf.mxu0
      %v466 = vadd.f32 0.0, %v465
      %467 = vmatmul.bf16.gmra.mxu0 %v327
      %v468 = vpop.f32.mrf.mxu0
      %v469 = vadd.f32 0.0, %v468
      %v470 = vpop.f32.mrf.mxu0
      %v471 = vadd.f32 0.0, %v470
      %472 = vmatmul.bf16.gmra.mxu0 %v328
      %v473 = vpop.f32.mrf.mxu0
      %v474 = vadd.f32 0.0, %v473
      %v475 = vpop.f32.mrf.mxu0
      %v476 = vadd.f32 0.0, %v475
      %477 = vmatmul.bf16.gmra.mxu0 %v329
      %v478 = vpop.f32.mrf.mxu0
      %v479 = vadd.f32 0.0, %v478
      %v480 = vpop.f32.mrf.mxu0
      %v481 = vadd.f32 0.0, %v480
      %482 = vdwg.mxu0
      %483 = vst [vmem:[%s210] sm:$0xff] %v404
      %484 = vst [vmem:[%s210 + $0x8] sm:$0xff] %v406
      %485 = vst [vmem:[%s210 + $0x10] sm:$0xff] %v409
      %486 = vst [vmem:[%s210 + $0x18] sm:$0xff] %v411
      %487 = vst [vmem:[%s210 + $0x20] sm:$0xff] %v414
      %488 = vst [vmem:[%s210 + $0x28] sm:$0xff] %v416
      %489 = vst [vmem:[%s210 + $0x30] sm:$0xff] %v419
      %490 = vst [vmem:[%s210 + $0x38] sm:$0xff] %v421
      %491 = vst [vmem:[%s210 + $0x40] sm:$0xff] %v424
      %492 = vst [vmem:[%s210 + $0x48] sm:$0xff] %v426
      %493 = vst [vmem:[%s210 + $0x50] sm:$0xff] %v429
      %494 = vst [vmem:[%s210 + $0x58] sm:$0xff] %v431
      %495 = vst [vmem:[%s210 + $0x60] sm:$0xff] %v434
      %496 = vst [vmem:[%s210 + $0x68] sm:$0xff] %v436
      %497 = vst [vmem:[%s210 + $0x70] sm:$0xff] %v439
      %498 = vst [vmem:[%s210 + $0x78] sm:$0xff] %v441
      %499 = vst [vmem:[%s210 + $0x80] sm:$0xff] %v444
      %500 = vst [vmem:[%s210 + $0x88] sm:$0xff] %v446
      %501 = vst [vmem:[%s210 + $0x90] sm:$0xff] %v449
      %502 = vst [vmem:[%s210 + $0x98] sm:$0xff] %v451
      %503 = vst [vmem:[%s210 + $0xa0] sm:$0xff] %v454
      %504 = vst [vmem:[%s210 + $0xa8] sm:$0xff] %v456
      %505 = vst [vmem:[%s210 + $0xb0] sm:$0xff] %v459
      %506 = vst [vmem:[%s210 + $0xb8] sm:$0xff] %v461
      %507 = vst [vmem:[%s210 + $0xc0] sm:$0xff] %v464
      %508 = vst [vmem:[%s210 + $0xc8] sm:$0xff] %v466
      %509 = vst [vmem:[%s210 + $0xd0] sm:$0xff] %v469
      %510 = vst [vmem:[%s210 + $0xd8] sm:$0xff] %v471
      %511 = vst [vmem:[%s210 + $0xe0] sm:$0xff] %v474
      %512 = vst [vmem:[%s210 + $0xe8] sm:$0xff] %v476
      %513 = vst [vmem:[%s210 + $0xf0] sm:$0xff] %v479
      %514 = vst [vmem:[%s210 + $0xf8] sm:$0xff] %v481
      %v515 = vadd.f32 %v404, %v406
      %v516 = vadd.f32 %v515, %v409
      %v517 = vadd.f32 %v516, %v411
      %v518 = vadd.f32 %v517, %v414
      %v519 = vadd.f32 %v518, %v416
      %v520 = vadd.f32 %v519, %v419
      %v521 = vadd.f32 %v520, %v421
      %v522 = vadd.f32 %v521, %v424
      %v523 = vadd.f32 %v522, %v426
      %v524 = vadd.f32 %v523, %v429
      %v525 = vadd.f32 %v524, %v431
      %v526 = vadd.f32 %v525, %v434
      %v527 = vadd.f32 %v526, %v436
      %v528 = vadd.f32 %v527, %v439
      %v529 = vadd.f32 %v528, %v441
      %v530 = vadd.f32 %v529, %v444
      %v531 = vadd.f32 %v530, %v446
      %v532 = vadd.f32 %v531, %v449
      %v533 = vadd.f32 %v532, %v451
      %v534 = vadd.f32 %v533, %v454
      %v535 = vadd.f32 %v534, %v456
      %v536 = vadd.f32 %v535, %v459
      %v537 = vadd.f32 %v536, %v461
      %v538 = vadd.f32 %v537, %v464
      %v539 = vadd.f32 %v538, %v466
      %v540 = vadd.f32 %v539, %v469
      %v541 = vadd.f32 %v540, %v471
      %v542 = vadd.f32 %v541, %v474
      %v543 = vadd.f32 %v542, %v476
      %v544 = vadd.f32 %v543, %v479
      %v545 = vadd.f32 %v544, %v481
      %v546 = vrot.slane %v545, 4
      %v547 = vadd.f32 %v545, %v546
      %v548 = vrot.slane %v547, 2
      %v549 = vadd.f32 %v547, %v548
      %v550 = vrot.slane %v549, 1
      %v551 = vadd.f32 %v549, %v550
      %552 = vst [vmem:[%s214] sm:$0x1] %v551
      %v553 = vmul.f32 %v404, %v404
      %v554 = vmul.f32 %v406, %v406
      %v555 = vmul.f32 %v409, %v409
      %v556 = vmul.f32 %v411, %v411
      %v557 = vmul.f32 %v414, %v414
      %v558 = vmul.f32 %v416, %v416
      %v559 = vmul.f32 %v419, %v419
      %v560 = vmul.f32 %v421, %v421
      %v561 = vmul.f32 %v424, %v424
      %v562 = vmul.f32 %v426, %v426
      %v563 = vmul.f32 %v429, %v429
      %v564 = vmul.f32 %v431, %v431
      %v565 = vmul.f32 %v434, %v434
      %v566 = vmul.f32 %v436, %v436
      %v567 = vmul.f32 %v439, %v439
      %v568 = vmul.f32 %v441, %v441
      %v569 = vmul.f32 %v444, %v444
      %v570 = vmul.f32 %v446, %v446
      %v571 = vmul.f32 %v449, %v449
      %v572 = vmul.f32 %v451, %v451
      %v573 = vmul.f32 %v454, %v454
      %v574 = vmul.f32 %v456, %v456
      %v575 = vmul.f32 %v459, %v459
      %v576 = vmul.f32 %v461, %v461
      %v577 = vmul.f32 %v464, %v464
      %v578 = vmul.f32 %v466, %v466
      %v579 = vmul.f32 %v469, %v469
      %v580 = vmul.f32 %v471, %v471
      %v581 = vmul.f32 %v474, %v474
      %v582 = vmul.f32 %v476, %v476
      %v583 = vmul.f32 %v479, %v479
      %v584 = vmul.f32 %v481, %v481
      %v585 = vadd.f32 %v553, %v554
      %v586 = vadd.f32 %v585, %v555
      %v587 = vadd.f32 %v586, %v556
      %v588 = vadd.f32 %v587, %v557
      %v589 = vadd.f32 %v588, %v558
      %v590 = vadd.f32 %v589, %v559
      %v591 = vadd.f32 %v590, %v560
      %v592 = vadd.f32 %v591, %v561
      %v593 = vadd.f32 %v592, %v562
      %v594 = vadd.f32 %v593, %v563
      %v595 = vadd.f32 %v594, %v564
      %v596 = vadd.f32 %v595, %v565
      %v597 = vadd.f32 %v596, %v566
      %v598 = vadd.f32 %v597, %v567
      %v599 = vadd.f32 %v598, %v568
      %v600 = vadd.f32 %v599, %v569
      %v601 = vadd.f32 %v600, %v570
      %v602 = vadd.f32 %v601, %v571
      %v603 = vadd.f32 %v602, %v572
      %v604 = vadd.f32 %v603, %v573
      %v605 = vadd.f32 %v604, %v574
      %v606 = vadd.f32 %v605, %v575
      %v607 = vadd.f32 %v606, %v576
      %v608 = vadd.f32 %v607, %v577
      %v609 = vadd.f32 %v608, %v578
      %v610 = vadd.f32 %v609, %v579
      %v611 = vadd.f32 %v610, %v580
      %v612 = vadd.f32 %v611, %v581
      %v613 = vadd.f32 %v612, %v582
      %v614 = vadd.f32 %v613, %v583
      %v615 = vadd.f32 %v614, %v584
      %v616 = vrot.slane %v615, 4
      %v617 = vadd.f32 %v615, %v616
      %v618 = vrot.slane %v617, 2
      %v619 = vadd.f32 %v617, %v618
      %v620 = vrot.slane %v619, 1
      %v621 = vadd.f32 %v619, %v620
      %622 = vst [vmem:[%s217] sm:$0x1] %v621
      %s623 = smul.u32 32, %s16
      %p624 = scmp.lt.s32.totalorder %s623, 63
      %s625 = scalar_select %p624, %s623, 63
      %s626 = smul.addr %s625, 8
      %s627 = scalar_lea.vmem %s2, %s626
      %p628 = scmp.lt.s32.totalorder %s16, 1
      %s629 = scalar_select %p628, %s16, 1
      %s630 = scalar_lea.vmem %s3, %s629
      %p631 = scmp.lt.s32.totalorder %s16, 1
      %s632 = scalar_select %p631, %s16, 1
      %s633 = scalar_lea.vmem %s4, %s632
      // Predicated region
      $region29: #{relu_conv_bn.2} parent=27 // pred_check
        %p634 = pneg %p81
      $region30: #{relu_conv_bn.2} parent=27 // pred_check_branch
        %636 = sbr.rel (%p634) target = $region32
      $region31: #{relu_conv_bn.2} parent=27 // pred_region
        %s637 = smul.u32 32, %s16
      $region32: #{relu_conv_bn.2} parent=27 // pred_fallthru
        _
      // Predicated region
      $region33: #{relu_conv_bn.2} parent=27 // pred_check
        %p638 = pneg %p107
      $region34: #{relu_conv_bn.2} parent=27 // pred_check_branch
        %640 = sbr.rel (%p638) target = $region36
      $region35: #{relu_conv_bn.2} parent=27 // pred_region
        _
      $region36: #{relu_conv_bn.2} parent=27 // pred_fallthru
        _
      // Predicated region
      $region37: #{relu_conv_bn.2} parent=27 // pred_check
        %p641 = pneg %p133
      $region38: #{relu_conv_bn.2} parent=27 // pred_check_branch
        %643 = sbr.rel (%p641) target = $region40
      $region39: #{relu_conv_bn.2} parent=27 // pred_region
        _
      $region40: #{relu_conv_bn.2} parent=27 // pred_fallthru
        _
    $region28: #{relu_conv_bn.2} parent=5 // pred_fallthru
      _
    %p644 = scmp.le.s32.totalorder 2, %s11
    // Predicated region
    $region41: #{relu_conv_bn.2} parent=5 // pred_check
      %p645 = pneg %p644
    $region42: #{relu_conv_bn.2} parent=5 // pred_check_branch
      %647 = sbr.rel (%p645) target = $region44
    $region43: #{relu_conv_bn.2} parent=5 // pred_region
      %s648 = ssub.s32 %s11, 2
      // Predicated region
      $region45: #{relu_conv_bn.2} parent=43 // pred_check
        %p649 = pneg %p87
      $region46: #{relu_conv_bn.2} parent=43 // pred_check_branch
        %651 = sbr.rel (%p649) target = $region48
      $region47: #{relu_conv_bn.2} parent=43 // pred_region
        %s652 = smul.u32 32, %s17
        %p653 = scmp.lt.s32.totalorder %s652, 63
        %s654 = scalar_select %p653, %s652, 63
        %s655 = smul.addr %s654, 8
        %s656 = scalar_lea.vmem %s2, %s655
      $region48: #{relu_conv_bn.2} parent=43 // pred_fallthru
        _
      // Predicated region
      $region49: #{relu_conv_bn.2} parent=43 // pred_check
        %p657 = pneg %p113
      $region50: #{relu_conv_bn.2} parent=43 // pred_check_branch
        %659 = sbr.rel (%p657) target = $region52
      $region51: #{relu_conv_bn.2} parent=43 // pred_region
        %p660 = scmp.lt.s32.totalorder %s17, 1
        %s661 = scalar_select %p660, %s17, 1
        %s662 = scalar_lea.vmem %s3, %s661
      $region52: #{relu_conv_bn.2} parent=43 // pred_fallthru
        _
      // Predicated region
      $region53: #{relu_conv_bn.2} parent=43 // pred_check
        %p663 = pneg %p139
      $region54: #{relu_conv_bn.2} parent=43 // pred_check_branch
        %665 = sbr.rel (%p663) target = $region56
      $region55: #{relu_conv_bn.2} parent=43 // pred_region
        %p666 = scmp.lt.s32.totalorder %s17, 1
        %s667 = scalar_select %p666, %s17, 1
        %s668 = scalar_lea.vmem %s4, %s667
      $region56: #{relu_conv_bn.2} parent=43 // pred_fallthru
        _
    $region44: #{relu_conv_bn.2} parent=5 // pred_fallthru
      _
  $region6: #{relu_conv_bn.2} parent=0 // loop_footer
    %s15 = sadd.s32 1, %s11
  $region7: #{relu_conv_bn.2} parent=0 // loop_footer_branch
    %10 = sbr.rel target = $region3
  $region8: #{relu_conv_bn.2} parent=0 // loop_exit
    _

</llo_original>
